<compile_context>
chip_gen: v6e
topology: v6e:2x2x1
jax: 0.10.0
libtpu: 0.0.40
codegen_flags: <defaults>
</compile_context>

<pallas_src>
import functools

import jax
import jax.numpy as jnp
from jax.experimental import pallas as pl
from jax.experimental.pallas import tpu as pltpu


# ----------------------------- Pallas kernels -----------------------------

def _fused_bn_kernel(x_ref, w_ref, b_ref, o_ref, sum_ref, sq_ref, *, eps):
    """Single-shot batch norm for VMEM-resident inputs.

    x_ref: (N, C, HW), w_ref/b_ref: (C, 1), o_ref: (N, C, HW),
    sum_ref/sq_ref: (C, 1) per-channel sum / sum-of-squares (for EMA glue)."""
    x = x_ref[...].astype(jnp.float32)                 # (N, C, HW)
    n_batch = x.shape[0]
    n_elems = x.shape[0] * x.shape[2]

    ps = jnp.sum(x, axis=2, keepdims=True)             # (N, C, 1) lane reduce
    ps2 = jnp.sum(x * x, axis=2, keepdims=True)        # (N, C, 1)
    s = ps[0]                                          # (C, 1)
    s2 = ps2[0]
    for i in range(1, n_batch):                        # small static unroll
        s = s + ps[i]
        s2 = s2 + ps2[i]

    mean = s / n_elems
    var = jnp.maximum(s2 / n_elems - mean * mean, 0.0)  # clamp: no NaN rsqrt
    inv_std = jax.lax.rsqrt(var + eps)
    scale = w_ref[...] * inv_std                        # (C, 1)
    shift = b_ref[...] - mean * scale                   # (C, 1)

    for i in range(n_batch):                            # 2-D lane-broadcast FMA
        o_ref[i] = (x[i] * scale + shift).astype(o_ref.dtype)

    sum_ref[...] = s
    sq_ref[...] = s2


def _row_stats_kernel(x_ref, ssum_ref, ssq_ref):
    """Per-(n,c)-row partial sums over the H*W lane axis."""
    x = x_ref[...].astype(jnp.float32)                  # (RT, HW)
    ssum_ref[...] = jnp.sum(x, axis=1, keepdims=True)   # (RT, 1)
    ssq_ref[...] = jnp.sum(x * x, axis=1, keepdims=True)


def _scale_shift_kernel(scale_ref, shift_ref, x_ref, o_ref):
    """y = x * scale_row + shift_row  (per-row scale/shift, lane broadcast)."""
    xf = x_ref[...].astype(jnp.float32)                 # (RT, HW)
    o_ref[...] = (xf * scale_ref[...] + shift_ref[...]).astype(o_ref.dtype)


# --------------------------- batch-norm dispatch ---------------------------

_FUSE_BYTES = 2 * 1024 * 1024   # fuse both passes when x (f32) fits comfortably
_FUSE_MAX_N = 32                # keep the static N unroll small
_TARGET_TILE_BYTES = 2 * 1024 * 1024   # ~2 MiB x-blocks in the tiled path


def _pick_row_tile(R, HW):
    """Largest multiple-of-8 divisor of R giving ~_TARGET_TILE_BYTES blocks."""
    if R % 8 != 0:
        return R                          # full-extent block (always legal)
    max_rt = max(8, (_TARGET_TILE_BYTES // (HW * 4)) // 8 * 8)
    best = 8
    rt = 8
    while rt <= min(R, max_rt):
        if R % rt == 0:
            best = rt
        rt += 8
    return best


def _batch_norm_pallas(x_nchw, weight, bias, *, eps, force_tiled=False):
    """Training-mode batch norm on NCHW input (no transposes; reshape views).

    Returns (y_nchw, ch_sum, ch_sumsq) with per-channel sum / sum-of-squares."""
    N, C, H, W = x_nchw.shape
    HW = H * W
    n_elems = N * HW

    use_fused = (not force_tiled
                 and x_nchw.size * 4 <= _FUSE_BYTES
                 and N <= _FUSE_MAX_N)

    if use_fused:
        x3d = x_nchw.reshape(N, C, HW)
        w2d = weight.reshape(C, 1).astype(jnp.float32)
        b2d = bias.reshape(C, 1).astype(jnp.float32)
        kern = functools.partial(_fused_bn_kernel, eps=float(eps))
        y3d, s, s2 = pl.pallas_call(
            kern,
            out_shape=(jax.ShapeDtypeStruct((N, C, HW), x_nchw.dtype),
                       jax.ShapeDtypeStruct((C, 1), jnp.float32),
                       jax.ShapeDtypeStruct((C, 1), jnp.float32)),
            grid_spec=pltpu.PrefetchScalarGridSpec(
                num_scalar_prefetch=0,
                grid=(1,),
                in_specs=[pl.BlockSpec((N, C, HW), lambda i: (0, 0, 0)),
                          pl.BlockSpec((C, 1), lambda i: (0, 0)),
                          pl.BlockSpec((C, 1), lambda i: (0, 0))],
                out_specs=(pl.BlockSpec((N, C, HW), lambda i: (0, 0, 0)),
                           pl.BlockSpec((C, 1), lambda i: (0, 0)),
                           pl.BlockSpec((C, 1), lambda i: (0, 0)))),
            compiler_params=pltpu.CompilerParams(
                dimension_semantics=("arbitrary",)),
        )(x3d, w2d, b2d)
        return y3d.reshape(N, C, H, W), s[:, 0], s2[:, 0]

    # ------------------------- tiled two-pass path -------------------------
    R = N * C
    x2d = x_nchw.reshape(R, HW)            # free view: rows are (n, c) pairs
    rt = _pick_row_tile(R, HW)
    grid = (R // rt,)
    vmem_limit = 64 * 1024 * 1024

    # pass 1: per-row partial sums (fully parallel over row tiles)
    row_sum, row_sq = pl.pallas_call(
        _row_stats_kernel,
        out_shape=(jax.ShapeDtypeStruct((R, 1), jnp.float32),
                   jax.ShapeDtypeStruct((R, 1), jnp.float32)),
        grid_spec=pltpu.PrefetchScalarGridSpec(
            num_scalar_prefetch=0,
            grid=grid,
            in_specs=[pl.BlockSpec((rt, HW), lambda i: (i, 0))],
            out_specs=(pl.BlockSpec((rt, 1), lambda i: (i, 0)),
                       pl.BlockSpec((rt, 1), lambda i: (i, 0)))),
        compiler_params=pltpu.CompilerParams(
            dimension_semantics=("parallel",),
            vmem_limit_bytes=vmem_limit),
    )(x2d)

    # tiny JAX glue on C elements: per-channel stats, precomputed scale/shift
    ch_sum = jnp.sum(row_sum.reshape(N, C), axis=0)
    ch_sq = jnp.sum(row_sq.reshape(N, C), axis=0)
    mean = ch_sum / n_elems
    var = jnp.maximum(ch_sq / n_elems - mean * mean, 0.0)
    inv_std = jax.lax.rsqrt(var + eps)
    scale_c = weight.astype(jnp.float32) * inv_std
    shift_c = bias.astype(jnp.float32) - mean * scale_c
    row_scale = jnp.tile(scale_c, N).reshape(R, 1)   # row r -> channel r % C
    row_shift = jnp.tile(shift_c, N).reshape(R, 1)

    # pass 2: pure load-FMA-store over lane-dense (rt, HW) blocks
    y2d = pl.pallas_call(
        _scale_shift_kernel,
        out_shape=jax.ShapeDtypeStruct((R, HW), x_nchw.dtype),
        grid_spec=pltpu.PrefetchScalarGridSpec(
            num_scalar_prefetch=0,
            grid=grid,
            in_specs=[pl.BlockSpec((rt, 1), lambda i: (i, 0)),
                      pl.BlockSpec((rt, 1), lambda i: (i, 0)),
                      pl.BlockSpec((rt, HW), lambda i: (i, 0))],
            out_specs=pl.BlockSpec((rt, HW), lambda i: (i, 0))),
        compiler_params=pltpu.CompilerParams(
            dimension_semantics=("parallel",),
            vmem_limit_bytes=vmem_limit),
    )(row_scale, row_shift, x2d)

    return y2d.reshape(N, C, H, W), ch_sum, ch_sq


# ------------------------- module-level forward ----------------------------

def _logit(z):
    return jnp.log(z / (1.0 - z))


def _gumbel_softmax_hard(logits, u, temp, eps=1e-10):
    z = logits + jnp.log(u + eps) - jnp.log(1.0 - u + eps)
    y = 1.0 / (1.0 + jnp.exp(-z / temp))
    # TODO(synk): hard=True straight-through gradient (y_hard - y).detach() + y
    # is not implemented; forward value matches the PyTorch module.
    return (y > 0.5).astype(jnp.float32)


def ss_gauss_vb_batchnorm_forward(
    x_nchw,
    params,
    running_mean,
    running_var,
    key,
    *,
    eps=1e-5,
    momentum=0.1,
    temp=0.5,
    gamma_prior=1e-4,
    sigma_0=1.0,
    freeze=0,
    testing=0,
    force_tiled=False,
):
    """Training-mode forward of SSGauss_VB_BatchNorm.

    Returns (y_nchw, new_running_mean, new_running_var, kl)."""
    N, C, H, W = x_nchw.shape
    weight_mu = params["weight_mu"]
    weight_rho = params["weight_rho"]
    bias_mu = params["bias_mu"]
    bias_rho = params["bias_rho"]
    theta = params["theta"]
    z_extra = params["z_extra"]

    k_u, k_we, k_be = jax.random.split(key, 3)

    # --- stochastic affine parameters (glue; per-feature, tiny) ---
    if freeze == 0:
        u = jax.random.uniform(k_u, (C,), dtype=jnp.float32)
        z = _gumbel_softmax_hard(theta, u, temp)
    else:
        z = z_extra
    weight_sigma = jnp.log1p(jnp.exp(weight_rho))
    bias_sigma = jnp.log1p(jnp.exp(bias_rho))
    weight_eps = jax.random.normal(k_we, (C,), dtype=jnp.float32)
    bias_eps = jax.random.normal(k_be, (C,), dtype=jnp.float32)
    z_use = z if testing == 0 else z_extra
    weight = z_use * (weight_mu + weight_sigma * weight_eps)
    bias = z_use * (bias_mu + bias_sigma * bias_eps)

    # --- KL (training) ---
    gamma = 1.0 / (1.0 + jnp.exp(-theta))
    gp = jnp.asarray(gamma_prior, jnp.float32)
    s0 = jnp.asarray(sigma_0, jnp.float32)
    kl_gamma = gamma * (jnp.log(gamma) - jnp.log(gp)) \
        + (1.0 - gamma) * (jnp.log(1.0 - gamma) - jnp.log(1.0 - gp))
    kl_weight = gamma * (jnp.log(s0) - jnp.log(weight_sigma)
                         + 0.5 * (weight_sigma**2 + weight_mu**2) / s0**2 - 0.5)
    kl_bias = gamma * (jnp.log(s0) - jnp.log(bias_sigma)
                       + 0.5 * (bias_sigma**2 + bias_mu**2) / s0**2 - 0.5)
    kl = jnp.sum(kl_gamma) + jnp.sum(kl_weight) + jnp.sum(kl_bias)

    # --- batch norm hot path (Pallas; transpose-free layout) ---
    y_nchw, ch_sum, ch_sq = _batch_norm_pallas(
        x_nchw, weight, bias, eps=eps, force_tiled=force_tiled)

    # --- running-stats EMA update (as F.batch_norm in training mode) ---
    n = float(N * H * W)
    batch_mean = ch_sum / n
    batch_var_biased = jnp.maximum(ch_sq / n - batch_mean * batch_mean, 0.0)
    batch_var_unbiased = batch_var_biased * (n / (n - 1.0))
    new_running_mean = (1.0 - momentum) * running_mean + momentum * batch_mean
    new_running_var = (1.0 - momentum) * running_var + momentum * batch_var_unbiased

    return y_nchw, new_running_mean, new_running_var, kl


# --------------------------------- main ------------------------------------

if __name__ == "__main__":
    N, C, H, W = 2, 4, 16, 16  # N*H*W = 512 per-channel elements

    # Deterministic parameter init matching reset_parameters():
    params = {
        "weight_mu": jnp.ones((C,), jnp.float32),
        "weight_rho": jnp.full((C,), -6.0, jnp.float32),
        "bias_mu": jnp.zeros((C,), jnp.float32),
        "bias_rho": jnp.full((C,), -6.0, jnp.float32),
        "theta": jnp.full((C,), _logit(jnp.float32(0.99)), jnp.float32),
        "z_extra": jnp.ones((C,), jnp.float32),
    }
    running_mean = jnp.zeros((C,), jnp.float32)
    running_var = jnp.ones((C,), jnp.float32)

    key = jax.random.PRNGKey(0)
    k_x, k_fwd = jax.random.split(key)
    x = jax.random.normal(k_x, (N, C, H, W), dtype=jnp.float32) * 2.0 + 0.5

    # Fused single-kernel path (small activation).
    y, new_rm, new_rv, kl = ss_gauss_vb_batchnorm_forward(
        x, params, running_mean, running_var, k_fwd,
        eps=1e-5, momentum=0.1, temp=0.5, gamma_prior=1e-4,
        sigma_0=1.0, freeze=0, testing=0)

    # Tiled two-pass path (same input, forced) -- exercises the large-input code.
    y_t, new_rm_t, new_rv_t, kl_t = ss_gauss_vb_batchnorm_forward(
        x, params, running_mean, running_var, k_fwd,
        eps=1e-5, momentum=0.1, temp=0.5, gamma_prior=1e-4,
        sigma_0=1.0, freeze=0, testing=0, force_tiled=True)

    jax.block_until_ready((y, new_rm, new_rv, kl, y_t, new_rm_t, new_rv_t))

    # Sanity check against a plain-JAX batch norm reference.
    # Recompute weight/bias with the same PRNG stream used inside forward.
    k_u, k_we, k_be = jax.random.split(k_fwd, 3)
    u = jax.random.uniform(k_u, (C,), dtype=jnp.float32)
    z = _gumbel_softmax_hard(params["theta"], u, 0.5)
    w_sig = jnp.log1p(jnp.exp(params["weight_rho"]))
    b_sig = jnp.log1p(jnp.exp(params["bias_rho"]))
    w_ref = z * (params["weight_mu"] + w_sig * jax.random.normal(k_we, (C,)))
    b_ref = z * (params["bias_mu"] + b_sig * jax.random.normal(k_be, (C,)))
    mean_ref = jnp.mean(x, axis=(0, 2, 3))
    var_ref = jnp.var(x, axis=(0, 2, 3))
    y_ref = (x - mean_ref[None, :, None, None]) \
        / jnp.sqrt(var_ref[None, :, None, None] + 1e-5) \
        * w_ref[None, :, None, None] + b_ref[None, :, None, None]

    assert jnp.allclose(y, y_ref, atol=1e-4, rtol=1e-4), "fused path mismatch"
    assert jnp.allclose(y_t, y_ref, atol=1e-4, rtol=1e-4), "tiled path mismatch"

    n = float(N * H * W)
    rm_ref = 0.9 * running_mean + 0.1 * mean_ref
    rv_ref = 0.9 * running_var + 0.1 * (var_ref * n / (n - 1.0))
    assert jnp.allclose(new_rm, rm_ref, atol=1e-3, rtol=1e-3), "running mean mismatch"
    assert jnp.allclose(new_rv, rv_ref, atol=1e-3, rtol=1e-3), "running var mismatch"
    assert jnp.allclose(new_rm_t, rm_ref, atol=1e-3, rtol=1e-3)
    assert jnp.allclose(new_rv_t, rv_ref, atol=1e-3, rtol=1e-3)

    print("KERNEL_OK")
</pallas_src>

<mosaic_0001>
module attributes {stable_mosaic.version = 11 : i64} {
  func.func @_fused_bn_kernel(%arg0: i32, %arg1: memref<2x4x256xf32, #tpu.memory_space<vmem>>, %arg2: memref<4x1xf32, #tpu.memory_space<vmem>>, %arg3: memref<4x1xf32, #tpu.memory_space<vmem>>, %arg4: memref<2x4x256xf32, #tpu.memory_space<vmem>>, %arg5: memref<4x1xf32, #tpu.memory_space<vmem>>, %arg6: memref<4x1xf32, #tpu.memory_space<vmem>>) attributes {dimension_semantics = [#tpu.dimension_semantics<arbitrary>], iteration_bounds = array<i64: 1>, scalar_prefetch = 0 : i64, scratch_operands = 0 : i64, tpu.core_type = #tpu.core_type<tc>, window_params = [{pipeline_mode = #tpu.pipeline_mode<synchronous>, transform_indices = @transform_0, window_bounds = array<i64: 2, 4, 256>}, {pipeline_mode = #tpu.pipeline_mode<synchronous>, transform_indices = @transform_1, window_bounds = array<i64: 4, 1>}, {pipeline_mode = #tpu.pipeline_mode<synchronous>, transform_indices = @transform_2, window_bounds = array<i64: 4, 1>}, {pipeline_mode = #tpu.pipeline_mode<synchronous>, transform_indices = @transform_3, window_bounds = array<i64: 2, 4, 256>}, {pipeline_mode = #tpu.pipeline_mode<synchronous>, transform_indices = @transform_4, window_bounds = array<i64: 4, 1>}, {pipeline_mode = #tpu.pipeline_mode<synchronous>, transform_indices = @transform_5, window_bounds = array<i64: 4, 1>}]} {
    %c0 = arith.constant 0 : index
    %c0_0 = arith.constant 0 : index
    %c0_1 = arith.constant 0 : index
    %0 = vector.load %arg1[%c0, %c0_0, %c0_1] : memref<2x4x256xf32, #tpu.memory_space<vmem>>, vector<2x4x256xf32>
    %cst = arith.constant dense<0.000000e+00> : vector<2x4xf32>
    %1 = vector.multi_reduction <add>, %0, %cst [2] : vector<2x4x256xf32> to vector<2x4xf32>
    %2 = vector.shape_cast %1 : vector<2x4xf32> to vector<2x4x1xf32>
    %3 = arith.mulf %0, %0 : vector<2x4x256xf32>
    %cst_2 = arith.constant dense<0.000000e+00> : vector<2x4xf32>
    %4 = vector.multi_reduction <add>, %3, %cst_2 [2] : vector<2x4x256xf32> to vector<2x4xf32>
    %5 = vector.shape_cast %4 : vector<2x4xf32> to vector<2x4x1xf32>
    %6 = vector.extract_strided_slice %2 {offsets = [0, 0, 0], sizes = [1, 4, 1], strides = [1, 1, 1]} : vector<2x4x1xf32> to vector<1x4x1xf32>
    %7 = vector.shape_cast %6 : vector<1x4x1xf32> to vector<4x1xf32>
    %8 = vector.extract_strided_slice %5 {offsets = [0, 0, 0], sizes = [1, 4, 1], strides = [1, 1, 1]} : vector<2x4x1xf32> to vector<1x4x1xf32>
    %9 = vector.shape_cast %8 : vector<1x4x1xf32> to vector<4x1xf32>
    %10 = vector.extract_strided_slice %2 {offsets = [1, 0, 0], sizes = [1, 4, 1], strides = [1, 1, 1]} : vector<2x4x1xf32> to vector<1x4x1xf32>
    %11 = vector.shape_cast %10 : vector<1x4x1xf32> to vector<4x1xf32>
    %12 = arith.addf %7, %11 : vector<4x1xf32>
    %13 = vector.extract_strided_slice %5 {offsets = [1, 0, 0], sizes = [1, 4, 1], strides = [1, 1, 1]} : vector<2x4x1xf32> to vector<1x4x1xf32>
    %14 = vector.shape_cast %13 : vector<1x4x1xf32> to vector<4x1xf32>
    %15 = arith.addf %9, %14 : vector<4x1xf32>
    %cst_3 = arith.constant 5.120000e+02 : f32
    %16 = vector.broadcast %cst_3 : f32 to vector<4x1xf32>
    %17 = arith.divf %12, %16 : vector<4x1xf32>
    %cst_4 = arith.constant 5.120000e+02 : f32
    %18 = vector.broadcast %cst_4 : f32 to vector<4x1xf32>
    %19 = arith.divf %15, %18 : vector<4x1xf32>
    %20 = arith.mulf %17, %17 : vector<4x1xf32>
    %21 = arith.subf %19, %20 : vector<4x1xf32>
    %cst_5 = arith.constant 0.000000e+00 : f32
    %22 = vector.broadcast %cst_5 : f32 to vector<4x1xf32>
    %23 = arith.maximumf %21, %22 : vector<4x1xf32>
    %cst_6 = arith.constant 9.99999974E-6 : f32
    %24 = vector.broadcast %cst_6 : f32 to vector<4x1xf32>
    %25 = arith.addf %23, %24 : vector<4x1xf32>
    %26 = math.rsqrt %25 : vector<4x1xf32>
    %c0_7 = arith.constant 0 : index
    %c0_8 = arith.constant 0 : index
    %27 = vector.load %arg2[%c0_7, %c0_8] : memref<4x1xf32, #tpu.memory_space<vmem>>, vector<4x1xf32>
    %28 = arith.mulf %27, %26 : vector<4x1xf32>
    %c0_9 = arith.constant 0 : index
    %c0_10 = arith.constant 0 : index
    %29 = vector.load %arg3[%c0_9, %c0_10] : memref<4x1xf32, #tpu.memory_space<vmem>>, vector<4x1xf32>
    %30 = arith.mulf %17, %28 : vector<4x1xf32>
    %31 = arith.subf %29, %30 : vector<4x1xf32>
    %32 = vector.extract_strided_slice %0 {offsets = [0, 0, 0], sizes = [1, 4, 256], strides = [1, 1, 1]} : vector<2x4x256xf32> to vector<1x4x256xf32>
    %33 = vector.shape_cast %32 : vector<1x4x256xf32> to vector<4x256xf32>
    %34 = vector.broadcast %28 : vector<4x1xf32> to vector<4x256xf32>
    %35 = arith.mulf %33, %34 : vector<4x256xf32>
    %36 = vector.broadcast %31 : vector<4x1xf32> to vector<4x256xf32>
    %37 = arith.addf %35, %36 : vector<4x256xf32>
    %c0_11 = arith.constant 0 : index
    %c0_12 = arith.constant 0 : index
    %c0_13 = arith.constant 0 : index
    %38 = vector.load %arg4[%c0_11, %c0_12, %c0_13] : memref<2x4x256xf32, #tpu.memory_space<vmem>>, vector<1x4x256xf32>
    %39 = vector.shape_cast %38 : vector<1x4x256xf32> to vector<4x256xf32>
    %40 = vector.shape_cast %37 : vector<4x256xf32> to vector<1x4x256xf32>
    tpu.vector_store %arg4[%c0_11, %c0_12, %c0_13], %40 {strides = array<i32>} : memref<2x4x256xf32, #tpu.memory_space<vmem>>, vector<1x4x256xf32>,
    %41 = vector.extract_strided_slice %0 {offsets = [1, 0, 0], sizes = [1, 4, 256], strides = [1, 1, 1]} : vector<2x4x256xf32> to vector<1x4x256xf32>
    %42 = vector.shape_cast %41 : vector<1x4x256xf32> to vector<4x256xf32>
    %43 = vector.broadcast %28 : vector<4x1xf32> to vector<4x256xf32>
    %44 = arith.mulf %42, %43 : vector<4x256xf32>
    %45 = vector.broadcast %31 : vector<4x1xf32> to vector<4x256xf32>
    %46 = arith.addf %44, %45 : vector<4x256xf32>
    %c1 = arith.constant 1 : index
    %c0_14 = arith.constant 0 : index
    %c0_15 = arith.constant 0 : index
    %47 = vector.load %arg4[%c1, %c0_14, %c0_15] : memref<2x4x256xf32, #tpu.memory_space<vmem>>, vector<1x4x256xf32>
    %48 = vector.shape_cast %47 : vector<1x4x256xf32> to vector<4x256xf32>
    %49 = vector.shape_cast %46 : vector<4x256xf32> to vector<1x4x256xf32>
    tpu.vector_store %arg4[%c1, %c0_14, %c0_15], %49 {strides = array<i32>} : memref<2x4x256xf32, #tpu.memory_space<vmem>>, vector<1x4x256xf32>,
    %c0_16 = arith.constant 0 : index
    %c0_17 = arith.constant 0 : index
    %50 = vector.load %arg5[%c0_16, %c0_17] : memref<4x1xf32, #tpu.memory_space<vmem>>, vector<4x1xf32>
    tpu.vector_store %arg5[%c0_16, %c0_17], %12 {strides = array<i32>} : memref<4x1xf32, #tpu.memory_space<vmem>>, vector<4x1xf32>,
    %c0_18 = arith.constant 0 : index
    %c0_19 = arith.constant 0 : index
    %51 = vector.load %arg6[%c0_18, %c0_19] : memref<4x1xf32, #tpu.memory_space<vmem>>, vector<4x1xf32>
    tpu.vector_store %arg6[%c0_18, %c0_19], %15 {strides = array<i32>} : memref<4x1xf32, #tpu.memory_space<vmem>>, vector<4x1xf32>,
    return
  }
  func.func @transform_0(%arg0: i32) -> (i32, i32, i32) {
    %c0_i32 = arith.constant 0 : i32
    %c0_i32_0 = arith.constant 0 : i32
    %c0_i32_1 = arith.constant 0 : i32
    %c0_i32_2 = arith.constant 0 : i32
    return %c0_i32, %c0_i32_0, %c0_i32_1 : i32, i32, i32
  }
  func.func @transform_1(%arg0: i32) -> (i32, i32) {
    %c0_i32 = arith.constant 0 : i32
    %c0_i32_0 = arith.constant 0 : i32
    %c0_i32_1 = arith.constant 0 : i32
    return %c0_i32, %c0_i32_0 : i32, i32
  }
  func.func @transform_2(%arg0: i32) -> (i32, i32) {
    %c0_i32 = arith.constant 0 : i32
    %c0_i32_0 = arith.constant 0 : i32
    %c0_i32_1 = arith.constant 0 : i32
    return %c0_i32, %c0_i32_0 : i32, i32
  }
  func.func @transform_3(%arg0: i32) -> (i32, i32, i32) {
    %c0_i32 = arith.constant 0 : i32
    %c0_i32_0 = arith.constant 0 : i32
    %c0_i32_1 = arith.constant 0 : i32
    %c0_i32_2 = arith.constant 0 : i32
    return %c0_i32, %c0_i32_0, %c0_i32_1 : i32, i32, i32
  }
  func.func @transform_4(%arg0: i32) -> (i32, i32) {
    %c0_i32 = arith.constant 0 : i32
    %c0_i32_0 = arith.constant 0 : i32
    %c0_i32_1 = arith.constant 0 : i32
    return %c0_i32, %c0_i32_0 : i32, i32
  }
  func.func @transform_5(%arg0: i32) -> (i32, i32) {
    %c0_i32 = arith.constant 0 : i32
    %c0_i32_0 = arith.constant 0 : i32
    %c0_i32_1 = arith.constant 0 : i32
    return %c0_i32, %c0_i32_0 : i32, i32
  }
}

</mosaic_0001>

<llo_original>
// kernel: tpu_custom_call.1
$region0: #{tpu_custom_call.1}
  #allocation0 [shape = 'u32[]', space=smem, size = 0x4, offset = 0x4, fixed_abs, tag = 'smem constant byte address 0x4 - core index']
  #allocation1 [shape = 'u32[144,128]{1,0:T(1,128)}', space=vmem, size = 0x12000, scoped, tag = 'internal scratch']
  %s0 = inlined_call_operand.hbm [shape: f32[2,4,256], index: 0, kind: input, shape index: {}]
  %s1 = inlined_call_operand.vmem [shape: f32[4,1], index: 1, kind: input, shape index: {}]
  %s2 = inlined_call_operand.vmem [shape: f32[4,1], index: 2, kind: input, shape index: {}]
  %s3 = inlined_call_operand.hbm [shape: f32[2,4,256], index: 3, kind: output, shape index: {0}]
  %s4 = inlined_call_operand.vmem [shape: f32[4,1], index: 4, kind: output, shape index: {1}]
  %s5 = inlined_call_operand.vmem [shape: f32[4,1], index: 5, kind: output, shape index: {2}]
  %6 = xla_tuple %s3, %s4, %s5
  %s7 = sld [smem:[#allocation0]]
  $region42: #{tpu_custom_call.1} parent=0
    _
  %s9 = ssub.s32 1, %s7
  %s10 = scalar_select 0, %s9, %s7
  $region1: #{tpu_custom_call.1} parent=0
    #allocation2 [shape = 'u8[8192]{0}', space=vmem, size = 0x2000, scoped, tag = 'input window, operand 0, single buffered']
    #allocation3 [shape = 's32[1]{0}', space=sflag, size = 0x4, scoped, tag = 'scoped memory for tpu_custom_call.1']
    #allocation4 [shape = 's32[1]{0}', space=sflag, size = 0x4, scoped, tag = 'scoped memory for tpu_custom_call.1']
    #allocation5 [shape = 'u8[8192]{0}', space=vmem, size = 0x2000, scoped, tag = 'output window, operand 0, single buffered']
    %11 = vsyncpa [#allocation3], 0
    %12 = vsyncpa [#allocation4], 0
    // Predicated region
    $region2: #{tpu_custom_call.1} parent=1 // pred_check
      _
    $region3: #{tpu_custom_call.1} parent=1 // pred_check_branch
      %14 = sbr.rel (0) target = $region5
    $region4: #{tpu_custom_call.1} parent=1 // pred_region
      %s16 = ssub.s32 256, 256
      %17 = vsyncadd [#allocation3], %s16
      %s18 = sshll.u32 [#allocation2], 4
      %s19 = int_to_ptr.vmem [resolvable:$true] %s18
      %24 = dma.hbm_to_vmem [thread:$0]  %s0, 256, %s19, [#allocation3], 128, 128, 8
    $region5: #{tpu_custom_call.1} parent=1 // pred_fallthru
      _
    // Predicated region
    $region6: #{tpu_custom_call.1} parent=1 // pred_check
      _
    $region7: #{tpu_custom_call.1} parent=1 // pred_check_branch
      %26 = sbr.rel (0) target = $region9
    $region8: #{tpu_custom_call.1} parent=1 // pred_region
      _
    $region9: #{tpu_custom_call.1} parent=1 // pred_fallthru
      _
    // Predicated region
    $region10: #{tpu_custom_call.1} parent=1 // pred_check
      _
    $region11: #{tpu_custom_call.1} parent=1 // pred_check_branch
      %28 = sbr.rel (0) target = $region13
    $region12: #{tpu_custom_call.1} parent=1 // pred_region
      _
    $region13: #{tpu_custom_call.1} parent=1 // pred_fallthru
      _
    // Predicated region
    $region14: #{tpu_custom_call.1} parent=1 // pred_check
      _
    $region15: #{tpu_custom_call.1} parent=1 // pred_check_branch
      %30 = sbr.rel (0) target = $region17
    $region16: #{tpu_custom_call.1} parent=1 // pred_region
      %31 = dma.done [#allocation3], 256
    $region17: #{tpu_custom_call.1} parent=1 // pred_fallthru
      _
    %v32 = vld [vmem:[#allocation2] sm:$0xff]
    %v33 = vld [vmem:[#allocation2 + $0x8] sm:$0xff]
    %v36 = vcombine.high %v32, %v32
    %v37 = vcombine.high %v33, %v33
    %vm40 = vcmask 1043456
    %v41 = vsel %vm40, %v32, 0.0
    %v42 = vsel %vm40, %v36, 0.0
    %v43 = vadd.f32 %v41, %v42
    %44 = vadd.xlane.f32.xlu0 %v43
    %v45 = vpop.xlane.xlu0 %44
    %v46 = vsel %vm40, %v33, 0.0
    %v47 = vsel %vm40, %v37, 0.0
    %v48 = vadd.f32 %v46, %v47
    %49 = vadd.xlane.f32.xlu0 %v48
    %v50 = vpop.xlane.xlu0 %49
    %v51 = vmul.f32 %v32, %v32
    %v52 = vmul.f32 %v33, %v33
    %v55 = vcombine.high %v51, %v51
    %v56 = vcombine.high %v52, %v52
    %v59 = vsel %vm40, %v51, 0.0
    %v60 = vsel %vm40, %v55, 0.0
    %v61 = vadd.f32 %v59, %v60
    %62 = vadd.xlane.f32.xlu0 %v61
    %v63 = vpop.xlane.xlu0 %62
    %v64 = vsel %vm40, %v52, 0.0
    %v65 = vsel %vm40, %v56, 0.0
    %v66 = vadd.f32 %v64, %v65
    %67 = vadd.xlane.f32.xlu0 %v66
    %v68 = vpop.xlane.xlu0 %67
    %v69 = vadd.f32 %v45, %v50
    %v70 = vadd.f32 %v63, %v68
    %v71 = vrcp.pop 512.0
    %v72 = vmul.f32 %v69, %v71
    %v73 = vmul.f32 %v70, %v71
    %v74 = vmul.f32 %v72, %v72
    %v75 = vsub.f32 %v73, %v74
    %v76 = vmax.f32 %v75, 0.0
    %v77 = vadd.f32 %v76, 1e-05
    %v78 = vrsqrt.pop %v77
    %v79 = vld [vmem:[%s1] sm:$0xf]
    %v80 = vmul.f32 %v79, %v78
    %v81 = vld [vmem:[%s2] sm:$0xf]
    %v82 = vmul.f32 %v72, %v80
    %v83 = vsub.f32 %v81, %v82
    %85 = vset.pattern.permute.xlu0 0
    %86 = vperm.xlu0 %85, %v80
    %v87 = vpop.permute.xlu0 %86
    %v89 = vunpack.c.l.s4 839922192
    %v90 = vunpack.c.0.s8 %v89
    %v91 = vlaneseq
    %v92 = vshrl.u32 %v91, 7
    %v93 = vsub.s32 %v90, %v92
    %v94 = vrot.slane %v87, %v93
    %v96 = vmul.f32 %v32, %v94
    %98 = vset.pattern.permute.xlu0 0
    %99 = vperm.xlu0 %98, %v83
    %v100 = vpop.permute.xlu0 %99
    %v102 = vunpack.c.l.s4 839922192
    %v103 = vunpack.c.0.s8 %v102
    %v104 = vlaneseq
    %v105 = vshrl.u32 %v104, 7
    %v106 = vsub.s32 %v103, %v105
    %v107 = vrot.slane %v100, %v106
    %v109 = vadd.f32 %v96, %v107
    %110 = vst [vmem:[#allocation5] sm:$0xff] %v109
    %v111 = vmul.f32 %v33, %v94
    %v112 = vadd.f32 %v111, %v107
    %s113 = scalar_lea.vmem [#allocation5], 8
    %114 = vst [vmem:[%s113] sm:$0xff] %v112
    %vm115 = vcmask 3072
    %116 = vst.msk [vmem:[%s4] sm:$0xf] %vm115, %v69
    %117 = vst.msk [vmem:[%s5] sm:$0xf] %vm115, %v70
    // Predicated region
    $region18: #{tpu_custom_call.1} parent=1 // pred_check
      _
    $region19: #{tpu_custom_call.1} parent=1 // pred_check_branch
      %119 = sbr.rel (0) target = $region21
    $region20: #{tpu_custom_call.1} parent=1 // pred_region
      %s121 = ssub.s32 256, 256
      %122 = vsyncadd [#allocation4], %s121
      %s123 = sshll.u32 [#allocation5], 4
      %s124 = int_to_ptr.vmem [resolvable:$true] %s123
      %129 = dma.vmem_to_hbm [thread:$0]  %s124, 256, %s3, [#allocation4], 128, 128, 8
    $region21: #{tpu_custom_call.1} parent=1 // pred_fallthru
      _
    // Predicated region
    $region22: #{tpu_custom_call.1} parent=1 // pred_check
      _
    $region23: #{tpu_custom_call.1} parent=1 // pred_check_branch
      %131 = sbr.rel (0) target = $region25
    $region24: #{tpu_custom_call.1} parent=1 // pred_region
      _
    $region25: #{tpu_custom_call.1} parent=1 // pred_fallthru
      _
    // Predicated region
    $region26: #{tpu_custom_call.1} parent=1 // pred_check
      _
    $region27: #{tpu_custom_call.1} parent=1 // pred_check_branch
      %133 = sbr.rel (0) target = $region29
    $region28: #{tpu_custom_call.1} parent=1 // pred_region
      _
    $region29: #{tpu_custom_call.1} parent=1 // pred_fallthru
      _
    // Predicated region
    $region30: #{tpu_custom_call.1} parent=1 // pred_check
      _
    $region31: #{tpu_custom_call.1} parent=1 // pred_check_branch
      %135 = sbr.rel (0) target = $region33
    $region32: #{tpu_custom_call.1} parent=1 // pred_region
      %136 = dma.done [#allocation4], 256
    $region33: #{tpu_custom_call.1} parent=1 // pred_fallthru
      _
    // Predicated region
    $region34: #{tpu_custom_call.1} parent=1 // pred_check
      _
    $region35: #{tpu_custom_call.1} parent=1 // pred_check_branch
      %138 = sbr.rel (0) target = $region37
    $region36: #{tpu_custom_call.1} parent=1 // pred_region
      _
    $region37: #{tpu_custom_call.1} parent=1 // pred_fallthru
      _
    // Predicated region
    $region38: #{tpu_custom_call.1} parent=1 // pred_check
      _
    $region39: #{tpu_custom_call.1} parent=1 // pred_check_branch
      %140 = sbr.rel (0) target = $region41
    $region40: #{tpu_custom_call.1} parent=1 // pred_region
      _
    $region41: #{tpu_custom_call.1} parent=1 // pred_fallthru
      _
    %141 = vsyncpa [#allocation3], 1
    %142 = vsyncpa [#allocation4], 1

</llo_original>
